<compile_context>
chip_gen: v7x
topology: tpu7x:2x2x1
jax: 0.10.0
libtpu: 0.0.40
codegen_flags: <defaults>
</compile_context>

<pallas_src>
import jax
import jax.numpy as jnp
from jax.experimental import pallas as pl
from jax.experimental.pallas import tpu as pltpu


def _mlp_kernel(x_ref, w1_ref, b1_ref, w2_ref, b2_ref, wo_ref, bo_ref, o_ref):
    x = x_ref[...]                                                       # (TR, P*in)
    h = jnp.dot(x, w1_ref[...], preferred_element_type=jnp.float32) + b1_ref[...]
    h = jnp.maximum(h, 0.0)                                              # (TR, P*hid)
    h = jnp.dot(h, w2_ref[...], preferred_element_type=jnp.float32) + b2_ref[...]
    h = jnp.maximum(h, 0.0)                                              # (TR, P*hid)
    out = jnp.dot(h, wo_ref[...], preferred_element_type=jnp.float32) + bo_ref[...]
    o_ref[...] = out.astype(o_ref.dtype)                                 # (TR, P*out)


def _block_diag(wt, p):
    """Block-diagonal replicate of wt (k, n) -> (p*k, p*n); built once at trace time."""
    k, n = wt.shape
    eye = jnp.eye(p, dtype=wt.dtype)
    return (eye[:, None, :, None] * wt[None, :, None, :]).reshape(p * k, p * n)


def simple_nn_forward(x, params, *, block_rows=4096):
    """x: (batch, input_size) float32.
    params: PyTorch-layout weights w* (out_features, in_features), biases b* (out_features,).
    Note: the `self.mean is not None` feature-scaling branch of SimpleNN.forward is
    inactive for a fresh module and is therefore not applied here."""
    w1, b1 = params["w1"], params["b1"]
    w2, b2 = params["w2"], params["b2"]
    wo, bo = params["wo"], params["bo"]

    batch, in_size = x.shape
    hid = w1.shape[0]
    out_size = wo.shape[0]

    # Pack P samples per lane-row (zero-copy reshape; no transpose, no full-array pad).
    p = max(1, 128 // in_size)
    if batch % p != 0:
        x = jnp.pad(x, ((0, p - batch % p), (0, 0)))     # tiny tail only
    rows = x.shape[0] // p
    x2 = x.reshape(rows, p * in_size)                     # contiguous view

    lane_in = p * in_size
    lane_h = p * hid
    lane_out = p * out_size

    # Block-diagonal replicated weights / tiled biases (built once per trace; ~tens of KB).
    w1e = _block_diag(w1.T, p)                            # (lane_in, lane_h)
    w2e = _block_diag(w2.T, p)                            # (lane_h,  lane_h)
    woe = _block_diag(wo.T, p)                            # (lane_h,  lane_out)
    b1e = jnp.tile(b1, p).reshape(1, lane_h)
    b2e = jnp.tile(b2, p).reshape(1, lane_h)
    boe = jnp.tile(bo, p).reshape(1, lane_out)

    # Row tile: big enough to amortize per-step overhead, small enough that the
    # double-buffered x/out tiles stay well under the v5e 16 MiB scoped-VMEM default.
    block_rows = max(8, (block_rows // 8) * 8)
    tr = rows if rows <= block_rows else block_rows       # full-array tile or multiple of 8
    grid = (pl.cdiv(rows, tr),)

    resident = lambda i: (0, 0)                           # weights stay put across steps
    flops = 2 * rows * (lane_in * lane_h + lane_h * lane_h + lane_h * lane_out)
    bytes_accessed = 4 * (rows * (lane_in + lane_out)
                          + w1e.size + w2e.size + woe.size
                          + b1e.size + b2e.size + boe.size)

    out2 = pl.pallas_call(
        _mlp_kernel,
        out_shape=jax.ShapeDtypeStruct((rows, lane_out), jnp.float32),
        grid_spec=pltpu.PrefetchScalarGridSpec(
            num_scalar_prefetch=0,
            grid=grid,
            in_specs=[
                pl.BlockSpec((tr, lane_in), lambda i: (i, 0)),   # packed x tile (pipelined)
                pl.BlockSpec((lane_in, lane_h), resident),       # W1 block-diag
                pl.BlockSpec((1, lane_h), resident),             # b1
                pl.BlockSpec((lane_h, lane_h), resident),        # W2 block-diag
                pl.BlockSpec((1, lane_h), resident),             # b2
                pl.BlockSpec((lane_h, lane_out), resident),      # Wo block-diag
                pl.BlockSpec((1, lane_out), resident),           # bo
            ],
            out_specs=pl.BlockSpec((tr, lane_out), lambda i: (i, 0)),
        ),
        compiler_params=pltpu.CompilerParams(
            dimension_semantics=("parallel",)),
        cost_estimate=pl.CostEstimate(
            flops=flops, transcendentals=0, bytes_accessed=bytes_accessed),
    )(x2, w1e, b1e, w2e, b2e, woe, boe)

    out = out2.reshape(rows * p, out_size)                # zero-copy un-pack
    if rows * p != batch:
        out = out[:batch]
    return out


def init_params(key, input_size, output_size, hidden_size=4):
    """Deterministic init mirroring nn.Linear's default U(-1/sqrt(fan_in), +1/sqrt(fan_in)).
    Weights in PyTorch layout (out_features, in_features); biases (out_features,)."""
    def linear(k, fan_in, fan_out):
        kw, kb = jax.random.split(k)
        bound = 1.0 / jnp.sqrt(jnp.float32(fan_in))
        w = jax.random.uniform(kw, (fan_out, fan_in), jnp.float32, -bound, bound)
        b = jax.random.uniform(kb, (fan_out,), jnp.float32, -bound, bound)
        return w, b

    k1, k2, k3 = jax.random.split(key, 3)
    w1, b1 = linear(k1, input_size, hidden_size)
    w2, b2 = linear(k2, hidden_size, hidden_size)
    wo, bo = linear(k3, hidden_size, output_size)
    return {"w1": w1, "b1": b1, "w2": w2, "b2": b2, "wo": wo, "bo": bo}


def reference_forward(x, p):
    h = jnp.maximum(x @ p["w1"].T + p["b1"], 0.0)
    h = jnp.maximum(h @ p["w2"].T + p["b2"], 0.0)
    return h @ p["wo"].T + p["bo"]


if __name__ == "__main__":
    key = jax.random.PRNGKey(0)
    k_params, k_x1, k_x2 = jax.random.split(key, 3)

    input_size, output_size = 8, 4
    params = init_params(k_params, input_size, output_size)

    # Small shape: batch=8 (natural SimpleNN usage).
    x_small = jax.random.normal(k_x1, (8, input_size), jnp.float32)
    out_small = jax.block_until_ready(simple_nn_forward(x_small, params))
    ref_small = reference_forward(x_small, params)
    assert out_small.shape == (8, output_size)
    assert jnp.allclose(out_small, ref_small, atol=1e-4, rtol=1e-4)

    # Multi-tile path: non-divisible batch exercises tail pad + partial last tile.
    x_big = jax.random.normal(k_x2, (16 * 1024 + 5, input_size), jnp.float32)
    out_big = jax.block_until_ready(simple_nn_forward(x_big, params, block_rows=512))
    ref_big = reference_forward(x_big, params)
    assert out_big.shape == (16 * 1024 + 5, output_size)
    assert jnp.allclose(out_big, ref_big, atol=1e-4, rtol=1e-4)

    print("KERNEL_OK")
</pallas_src>

<mosaic_0001>
module attributes {stable_mosaic.version = 11 : i64} {
  func.func @_mlp_kernel(%arg0: i32, %arg1: memref<1x128xf32, #tpu.memory_space<vmem>>, %arg2: memref<128x64xf32, #tpu.memory_space<vmem>>, %arg3: memref<1x64xf32, #tpu.memory_space<vmem>>, %arg4: memref<64x64xf32, #tpu.memory_space<vmem>>, %arg5: memref<1x64xf32, #tpu.memory_space<vmem>>, %arg6: memref<64x64xf32, #tpu.memory_space<vmem>>, %arg7: memref<1x64xf32, #tpu.memory_space<vmem>>, %arg8: memref<1x64xf32, #tpu.memory_space<vmem>>) attributes {dimension_semantics = [#tpu.dimension_semantics<parallel>], iteration_bounds = array<i64: 1>, scalar_prefetch = 0 : i64, scratch_operands = 0 : i64, tpu.core_type = #tpu.core_type<tc>, window_params = [{transform_indices = @transform_0, window_bounds = array<i64: 1, 128>}, {pipeline_mode = #tpu.pipeline_mode<synchronous>, transform_indices = @transform_1, window_bounds = array<i64: 128, 64>}, {pipeline_mode = #tpu.pipeline_mode<synchronous>, transform_indices = @transform_2, window_bounds = array<i64: 1, 64>}, {pipeline_mode = #tpu.pipeline_mode<synchronous>, transform_indices = @transform_3, window_bounds = array<i64: 64, 64>}, {pipeline_mode = #tpu.pipeline_mode<synchronous>, transform_indices = @transform_4, window_bounds = array<i64: 1, 64>}, {pipeline_mode = #tpu.pipeline_mode<synchronous>, transform_indices = @transform_5, window_bounds = array<i64: 64, 64>}, {pipeline_mode = #tpu.pipeline_mode<synchronous>, transform_indices = @transform_6, window_bounds = array<i64: 1, 64>}, {transform_indices = @transform_7, window_bounds = array<i64: 1, 64>}]} {
    %c0 = arith.constant 0 : index
    %c0_0 = arith.constant 0 : index
    %0 = vector.load %arg1[%c0, %c0_0] : memref<1x128xf32, #tpu.memory_space<vmem>>, vector<1x128xf32>
    %c0_1 = arith.constant 0 : index
    %c0_2 = arith.constant 0 : index
    %1 = vector.load %arg2[%c0_1, %c0_2] : memref<128x64xf32, #tpu.memory_space<vmem>>, vector<128x64xf32>
    %cst = arith.constant dense<0.000000e+00> : vector<1x64xf32>
    %2 = tpu.matmul %0, %1, %cst {dimension_numbers = #tpu.dot_dimension_numbers<[1], [0], [0], [1], [0, 0, 1, 1], [], []>} : vector<1x128xf32>, vector<128x64xf32>, vector<1x64xf32> -> vector<1x64xf32>
    %c0_3 = arith.constant 0 : index
    %c0_4 = arith.constant 0 : index
    %3 = vector.load %arg3[%c0_3, %c0_4] : memref<1x64xf32, #tpu.memory_space<vmem>>, vector<1x64xf32>
    %4 = arith.addf %2, %3 : vector<1x64xf32>
    %cst_5 = arith.constant 0.000000e+00 : f32
    %5 = vector.broadcast %cst_5 : f32 to vector<1x64xf32>
    %6 = arith.maximumf %4, %5 : vector<1x64xf32>
    %c0_6 = arith.constant 0 : index
    %c0_7 = arith.constant 0 : index
    %7 = vector.load %arg4[%c0_6, %c0_7] : memref<64x64xf32, #tpu.memory_space<vmem>>, vector<64x64xf32>
    %cst_8 = arith.constant dense<0.000000e+00> : vector<1x64xf32>
    %8 = tpu.matmul %6, %7, %cst_8 {dimension_numbers = #tpu.dot_dimension_numbers<[1], [0], [0], [1], [0, 0, 1, 1], [], []>} : vector<1x64xf32>, vector<64x64xf32>, vector<1x64xf32> -> vector<1x64xf32>
    %c0_9 = arith.constant 0 : index
    %c0_10 = arith.constant 0 : index
    %9 = vector.load %arg5[%c0_9, %c0_10] : memref<1x64xf32, #tpu.memory_space<vmem>>, vector<1x64xf32>
    %10 = arith.addf %8, %9 : vector<1x64xf32>
    %cst_11 = arith.constant 0.000000e+00 : f32
    %11 = vector.broadcast %cst_11 : f32 to vector<1x64xf32>
    %12 = arith.maximumf %10, %11 : vector<1x64xf32>
    %c0_12 = arith.constant 0 : index
    %c0_13 = arith.constant 0 : index
    %13 = vector.load %arg6[%c0_12, %c0_13] : memref<64x64xf32, #tpu.memory_space<vmem>>, vector<64x64xf32>
    %cst_14 = arith.constant dense<0.000000e+00> : vector<1x64xf32>
    %14 = tpu.matmul %12, %13, %cst_14 {dimension_numbers = #tpu.dot_dimension_numbers<[1], [0], [0], [1], [0, 0, 1, 1], [], []>} : vector<1x64xf32>, vector<64x64xf32>, vector<1x64xf32> -> vector<1x64xf32>
    %c0_15 = arith.constant 0 : index
    %c0_16 = arith.constant 0 : index
    %15 = vector.load %arg7[%c0_15, %c0_16] : memref<1x64xf32, #tpu.memory_space<vmem>>, vector<1x64xf32>
    %16 = arith.addf %14, %15 : vector<1x64xf32>
    %c0_17 = arith.constant 0 : index
    %c0_18 = arith.constant 0 : index
    %17 = vector.load %arg8[%c0_17, %c0_18] : memref<1x64xf32, #tpu.memory_space<vmem>>, vector<1x64xf32>
    tpu.vector_store %arg8[%c0_17, %c0_18], %16 {strides = array<i32>} : memref<1x64xf32, #tpu.memory_space<vmem>>, vector<1x64xf32>,
    return
  }
  func.func @transform_0(%arg0: i32) -> (i32, i32) {
    %c0_i32 = arith.constant 0 : i32
    %c0_i32_0 = arith.constant 0 : i32
    return %arg0, %c0_i32 : i32, i32
  }
  func.func @transform_1(%arg0: i32) -> (i32, i32) {
    %c0_i32 = arith.constant 0 : i32
    %c0_i32_0 = arith.constant 0 : i32
    %c0_i32_1 = arith.constant 0 : i32
    return %c0_i32, %c0_i32_0 : i32, i32
  }
  func.func @transform_2(%arg0: i32) -> (i32, i32) {
    %c0_i32 = arith.constant 0 : i32
    %c0_i32_0 = arith.constant 0 : i32
    %c0_i32_1 = arith.constant 0 : i32
    return %c0_i32, %c0_i32_0 : i32, i32
  }
  func.func @transform_3(%arg0: i32) -> (i32, i32) {
    %c0_i32 = arith.constant 0 : i32
    %c0_i32_0 = arith.constant 0 : i32
    %c0_i32_1 = arith.constant 0 : i32
    return %c0_i32, %c0_i32_0 : i32, i32
  }
  func.func @transform_4(%arg0: i32) -> (i32, i32) {
    %c0_i32 = arith.constant 0 : i32
    %c0_i32_0 = arith.constant 0 : i32
    %c0_i32_1 = arith.constant 0 : i32
    return %c0_i32, %c0_i32_0 : i32, i32
  }
  func.func @transform_5(%arg0: i32) -> (i32, i32) {
    %c0_i32 = arith.constant 0 : i32
    %c0_i32_0 = arith.constant 0 : i32
    %c0_i32_1 = arith.constant 0 : i32
    return %c0_i32, %c0_i32_0 : i32, i32
  }
  func.func @transform_6(%arg0: i32) -> (i32, i32) {
    %c0_i32 = arith.constant 0 : i32
    %c0_i32_0 = arith.constant 0 : i32
    %c0_i32_1 = arith.constant 0 : i32
    return %c0_i32, %c0_i32_0 : i32, i32
  }
  func.func @transform_7(%arg0: i32) -> (i32, i32) {
    %c0_i32 = arith.constant 0 : i32
    %c0_i32_0 = arith.constant 0 : i32
    return %arg0, %c0_i32 : i32, i32
  }
}

</mosaic_0001>

<llo_original>
// kernel: tpu_custom_call.1
$region0: #{tpu_custom_call.1}
  #allocation0 [shape = 'u32[]', space=smem, size = 0x4, offset = 0x4, fixed_abs, tag = 'smem constant byte address 0x4 - core index']
  #allocation1 [shape = 'u32[144,128]{1,0:T(1,128)}', space=vmem, size = 0x12000, scoped, tag = 'internal scratch']
  %s0 = inlined_call_operand.vmem [shape: f32[1,128], index: 0, kind: input, shape index: {}]
  %s1 = inlined_call_operand.vmem [shape: f32[128,64], index: 1, kind: input, shape index: {}]
  %s2 = inlined_call_operand.vmem [shape: f32[1,64], index: 2, kind: input, shape index: {}]
  %s3 = inlined_call_operand.vmem [shape: f32[64,64], index: 3, kind: input, shape index: {}]
  %s4 = inlined_call_operand.vmem [shape: f32[1,64], index: 4, kind: input, shape index: {}]
  %s5 = inlined_call_operand.vmem [shape: f32[64,64], index: 5, kind: input, shape index: {}]
  %s6 = inlined_call_operand.vmem [shape: f32[1,64], index: 6, kind: input, shape index: {}]
  %s7 = inlined_call_operand.hbm [shape: f32[1,64], index: 7, kind: output, shape index: {}]
  %s8 = sld [smem:[#allocation0]]
  $region38: #{tpu_custom_call.1} parent=0
    _
  %s10 = ssub.s32 1, %s8
  %s11 = scalar_select 0, %s10, %s8
  $region1: #{tpu_custom_call.1} parent=0
    #allocation2 [shape = 'u8[512]{0}', space=vmem, size = 0x400, scoped, tag = 'output window, operand 0, single buffered']
    #allocation3 [shape = 's32[1]{0}', space=sflag, size = 0x4, scoped, tag = 'scoped memory for tpu_custom_call.1']
    %12 = vsyncpa [#allocation3], 0
    // Predicated region
    $region2: #{tpu_custom_call.1} parent=1 // pred_check
      _
    $region3: #{tpu_custom_call.1} parent=1 // pred_check_branch
      %14 = sbr.rel (0) target = $region5
    $region4: #{tpu_custom_call.1} parent=1 // pred_region
      _
    $region5: #{tpu_custom_call.1} parent=1 // pred_fallthru
      _
    // Predicated region
    $region6: #{tpu_custom_call.1} parent=1 // pred_check
      _
    $region7: #{tpu_custom_call.1} parent=1 // pred_check_branch
      %16 = sbr.rel (0) target = $region9
    $region8: #{tpu_custom_call.1} parent=1 // pred_region
      _
    $region9: #{tpu_custom_call.1} parent=1 // pred_fallthru
      _
    // Predicated region
    $region10: #{tpu_custom_call.1} parent=1 // pred_check
      _
    $region11: #{tpu_custom_call.1} parent=1 // pred_check_branch
      %18 = sbr.rel (0) target = $region13
    $region12: #{tpu_custom_call.1} parent=1 // pred_region
      _
    $region13: #{tpu_custom_call.1} parent=1 // pred_fallthru
      _
    // Predicated region
    $region14: #{tpu_custom_call.1} parent=1 // pred_check
      _
    $region15: #{tpu_custom_call.1} parent=1 // pred_check_branch
      %20 = sbr.rel (0) target = $region17
    $region16: #{tpu_custom_call.1} parent=1 // pred_region
      _
    $region17: #{tpu_custom_call.1} parent=1 // pred_fallthru
      _
    // Predicated region
    $region18: #{tpu_custom_call.1} parent=1 // pred_check
      _
    $region19: #{tpu_custom_call.1} parent=1 // pred_check_branch
      %22 = sbr.rel (0) target = $region21
    $region20: #{tpu_custom_call.1} parent=1 // pred_region
      _
    $region21: #{tpu_custom_call.1} parent=1 // pred_fallthru
      _
    // Predicated region
    $region22: #{tpu_custom_call.1} parent=1 // pred_check
      _
    $region23: #{tpu_custom_call.1} parent=1 // pred_check_branch
      %24 = sbr.rel (0) target = $region25
    $region24: #{tpu_custom_call.1} parent=1 // pred_region
      _
    $region25: #{tpu_custom_call.1} parent=1 // pred_fallthru
      _
    // Predicated region
    $region26: #{tpu_custom_call.1} parent=1 // pred_check
      _
    $region27: #{tpu_custom_call.1} parent=1 // pred_check_branch
      %26 = sbr.rel (0) target = $region29
    $region28: #{tpu_custom_call.1} parent=1 // pred_region
      _
    $region29: #{tpu_custom_call.1} parent=1 // pred_fallthru
      _
    %v27 = vld [vmem:[%s0] sm:$0x1]
    %v28 = vld [vmem:[%s1] sm:$0xff]
    %v29 = vld [vmem:[%s1 + $0x8] sm:$0xff]
    %v30 = vld [vmem:[%s1 + $0x10] sm:$0xff]
    %v31 = vld [vmem:[%s1 + $0x18] sm:$0xff]
    %v32 = vld [vmem:[%s1 + $0x20] sm:$0xff]
    %v33 = vld [vmem:[%s1 + $0x28] sm:$0xff]
    %v34 = vld [vmem:[%s1 + $0x30] sm:$0xff]
    %v35 = vld [vmem:[%s1 + $0x38] sm:$0xff]
    %v36 = vld [vmem:[%s1 + $0x40] sm:$0xff]
    %v37 = vld [vmem:[%s1 + $0x48] sm:$0xff]
    %v38 = vld [vmem:[%s1 + $0x50] sm:$0xff]
    %v39 = vld [vmem:[%s1 + $0x58] sm:$0xff]
    %v40 = vld [vmem:[%s1 + $0x60] sm:$0xff]
    %v41 = vld [vmem:[%s1 + $0x68] sm:$0xff]
    %v42 = vld [vmem:[%s1 + $0x70] sm:$0xff]
    %v43 = vld [vmem:[%s1 + $0x78] sm:$0xff]
    %v44 = vld [vmem:[%s2] sm:$0x1]
    %45 = vmatprep.subr.mxu0 0.0
    %46 = vmatpush1.msra.mxu0 %v28
    %47 = vmatprep.subr.mxu0 0.0
    %48 = vmatpush1.msra.mxu0 %v29
    %49 = vmatprep.subr.mxu0 0.0
    %50 = vmatpush1.msra.mxu0 %v30
    %51 = vmatprep.subr.mxu0 0.0
    %52 = vmatpush1.msra.mxu0 %v31
    %53 = vmatprep.subr.mxu0 0.0
    %54 = vmatpush1.msra.mxu0 %v32
    %55 = vmatprep.subr.mxu0 0.0
    %56 = vmatpush1.msra.mxu0 %v33
    %57 = vmatprep.subr.mxu0 0.0
    %58 = vmatpush1.msra.mxu0 %v34
    %59 = vmatprep.subr.mxu0 0.0
    %60 = vmatpush1.msra.mxu0 %v35
    %61 = vmatprep.subr.mxu0 0.0
    %62 = vmatpush1.msra.mxu0 %v36
    %63 = vmatprep.subr.mxu0 0.0
    %64 = vmatpush1.msra.mxu0 %v37
    %65 = vmatprep.subr.mxu0 0.0
    %66 = vmatpush1.msra.mxu0 %v38
    %67 = vmatprep.subr.mxu0 0.0
    %68 = vmatpush1.msra.mxu0 %v39
    %69 = vmatprep.subr.mxu0 0.0
    %70 = vmatpush1.msra.mxu0 %v40
    %71 = vmatprep.subr.mxu0 0.0
    %72 = vmatpush1.msra.mxu0 %v41
    %73 = vmatprep.subr.mxu0 0.0
    %74 = vmatpush1.msra.mxu0 %v42
    %75 = vmatprep.subr.mxu0 0.0
    %76 = vmatpush1.msra.mxu0 %v43
    %77 = vmatprep.subr.mxu0 0.0
    %78 = vmatpush1.msra.mxu0 0.0
    %79 = vmatprep.subr.mxu0 0.0
    %80 = vmatpush1.msra.mxu0 0.0
    %81 = vmatprep.subr.mxu0 0.0
    %82 = vmatpush1.msra.mxu0 0.0
    %83 = vmatprep.subr.mxu0 0.0
    %84 = vmatpush1.msra.mxu0 0.0
    %85 = vmatprep.subr.mxu0 0.0
    %86 = vmatpush1.msra.mxu0 0.0
    %87 = vmatprep.subr.mxu0 0.0
    %88 = vmatpush1.msra.mxu0 0.0
    %89 = vmatprep.subr.mxu0 0.0
    %90 = vmatpush1.msra.mxu0 0.0
    %91 = vmatprep.subr.mxu0 0.0
    %92 = vmatpush1.msra.mxu0 0.0
    %93 = vmatprep.subr.mxu0 0.0
    %94 = vmatpush1.msra.mxu0 0.0
    %95 = vmatprep.subr.mxu0 0.0
    %96 = vmatpush1.msra.mxu0 0.0
    %97 = vmatprep.subr.mxu0 0.0
    %98 = vmatpush1.msra.mxu0 0.0
    %99 = vmatprep.subr.mxu0 0.0
    %100 = vmatpush1.msra.mxu0 0.0
    %101 = vmatprep.subr.mxu0 0.0
    %102 = vmatpush1.msra.mxu0 0.0
    %103 = vmatprep.subr.mxu0 0.0
    %104 = vmatpush1.msra.mxu0 0.0
    %105 = vmatprep.subr.mxu0 0.0
    %106 = vmatpush1.msra.mxu0 0.0
    %107 = vmatprep.subr.mxu0 0.0
    %108 = vmatpush1.msra.mxu0 0.0
    %109 = vmatprep.mubr.f32.mxu0 0.0
    %110 = vmatmul.mubr.f32.gmra.mrb[0].mxu0 %v27
    %v111 = vpop.f32.mrb[0].mxu0
    %v112 = vadd.f32 %v44, %v111
    %v113 = vpop.f32.mrb[0].mxu0
    %114 = vdwg.mxu0
    %v115 = vmax.f32 %v112, 0.0
    %v116 = vld [vmem:[%s3] sm:$0xff]
    %v117 = vld [vmem:[%s3 + $0x8] sm:$0xff]
    %v118 = vld [vmem:[%s3 + $0x10] sm:$0xff]
    %v119 = vld [vmem:[%s3 + $0x18] sm:$0xff]
    %v120 = vld [vmem:[%s3 + $0x20] sm:$0xff]
    %v121 = vld [vmem:[%s3 + $0x28] sm:$0xff]
    %v122 = vld [vmem:[%s3 + $0x30] sm:$0xff]
    %v123 = vld [vmem:[%s3 + $0x38] sm:$0xff]
    %v124 = vld [vmem:[%s4] sm:$0x1]
    %vm125 = vcmask 523264
    %v127 = vsel %vm125, %v115, 0
    %129 = vmatprep.subr.mxu0 0.0
    %130 = vmatpush1.msra.mxu0 %v116
    %131 = vmatprep.subr.mxu0 0.0
    %132 = vmatpush1.msra.mxu0 %v117
    %133 = vmatprep.subr.mxu0 0.0
    %134 = vmatpush1.msra.mxu0 %v118
    %135 = vmatprep.subr.mxu0 0.0
    %136 = vmatpush1.msra.mxu0 %v119
    %137 = vmatprep.subr.mxu0 0.0
    %138 = vmatpush1.msra.mxu0 %v120
    %139 = vmatprep.subr.mxu0 0.0
    %140 = vmatpush1.msra.mxu0 %v121
    %141 = vmatprep.subr.mxu0 0.0
    %142 = vmatpush1.msra.mxu0 %v122
    %143 = vmatprep.subr.mxu0 0.0
    %144 = vmatpush1.msra.mxu0 %v123
    %145 = vmatprep.subr.mxu0 0.0
    %146 = vmatpush1.msra.mxu0 0.0
    %147 = vmatprep.subr.mxu0 0.0
    %148 = vmatpush1.msra.mxu0 0.0
    %149 = vmatprep.subr.mxu0 0.0
    %150 = vmatpush1.msra.mxu0 0.0
    %151 = vmatprep.subr.mxu0 0.0
    %152 = vmatpush1.msra.mxu0 0.0
    %153 = vmatprep.subr.mxu0 0.0
    %154 = vmatpush1.msra.mxu0 0.0
    %155 = vmatprep.subr.mxu0 0.0
    %156 = vmatpush1.msra.mxu0 0.0
    %157 = vmatprep.subr.mxu0 0.0
    %158 = vmatpush1.msra.mxu0 0.0
    %159 = vmatprep.subr.mxu0 0.0
    %160 = vmatpush1.msra.mxu0 0.0
    %161 = vmatprep.subr.mxu0 0.0
    %162 = vmatpush1.msra.mxu0 0.0
    %163 = vmatprep.subr.mxu0 0.0
    %164 = vmatpush1.msra.mxu0 0.0
    %165 = vmatprep.subr.mxu0 0.0
    %166 = vmatpush1.msra.mxu0 0.0
    %167 = vmatprep.subr.mxu0 0.0
    %168 = vmatpush1.msra.mxu0 0.0
    %169 = vmatprep.subr.mxu0 0.0
    %170 = vmatpush1.msra.mxu0 0.0
    %171 = vmatprep.subr.mxu0 0.0
    %172 = vmatpush1.msra.mxu0 0.0
    %173 = vmatprep.subr.mxu0 0.0
    %174 = vmatpush1.msra.mxu0 0.0
    %175 = vmatprep.subr.mxu0 0.0
    %176 = vmatpush1.msra.mxu0 0.0
    %177 = vmatprep.subr.mxu0 0.0
    %178 = vmatpush1.msra.mxu0 0.0
    %179 = vmatprep.subr.mxu0 0.0
    %180 = vmatpush1.msra.mxu0 0.0
    %181 = vmatprep.subr.mxu0 0.0
    %182 = vmatpush1.msra.mxu0 0.0
    %183 = vmatprep.subr.mxu0 0.0
    %184 = vmatpush1.msra.mxu0 0.0
    %185 = vmatprep.subr.mxu0 0.0
    %186 = vmatpush1.msra.mxu0 0.0
    %187 = vmatprep.subr.mxu0 0.0
    %188 = vmatpush1.msra.mxu0 0.0
    %189 = vmatprep.subr.mxu0 0.0
    %190 = vmatpush1.msra.mxu0 0.0
    %191 = vmatprep.subr.mxu0 0.0
    %192 = vmatpush1.msra.mxu0 0.0
    %193 = vmatprep.mubr.f32.mxu0 0.0
    %194 = vmatmul.mubr.f32.gmra.mrb[0].mxu0 %v127
    %v195 = vpop.f32.mrb[0].mxu0
    %v196 = vadd.f32 %v124, %v195
    %v197 = vpop.f32.mrb[0].mxu0
    %198 = vdwg.mxu0
    %v199 = vmax.f32 %v196, 0.0
    %v200 = vld [vmem:[%s5] sm:$0xff]
    %v201 = vld [vmem:[%s5 + $0x8] sm:$0xff]
    %v202 = vld [vmem:[%s5 + $0x10] sm:$0xff]
    %v203 = vld [vmem:[%s5 + $0x18] sm:$0xff]
    %v204 = vld [vmem:[%s5 + $0x20] sm:$0xff]
    %v205 = vld [vmem:[%s5 + $0x28] sm:$0xff]
    %v206 = vld [vmem:[%s5 + $0x30] sm:$0xff]
    %v207 = vld [vmem:[%s5 + $0x38] sm:$0xff]
    %v208 = vld [vmem:[%s6] sm:$0x1]
    %v210 = vsel %vm125, %v199, 0
    %212 = vmatprep.subr.mxu0 0.0
    %213 = vmatpush1.msra.mxu0 %v200
    %214 = vmatprep.subr.mxu0 0.0
    %215 = vmatpush1.msra.mxu0 %v201
    %216 = vmatprep.subr.mxu0 0.0
    %217 = vmatpush1.msra.mxu0 %v202
    %218 = vmatprep.subr.mxu0 0.0
    %219 = vmatpush1.msra.mxu0 %v203
    %220 = vmatprep.subr.mxu0 0.0
    %221 = vmatpush1.msra.mxu0 %v204
    %222 = vmatprep.subr.mxu0 0.0
    %223 = vmatpush1.msra.mxu0 %v205
    %224 = vmatprep.subr.mxu0 0.0
    %225 = vmatpush1.msra.mxu0 %v206
    %226 = vmatprep.subr.mxu0 0.0
    %227 = vmatpush1.msra.mxu0 %v207
    %228 = vmatprep.subr.mxu0 0.0
    %229 = vmatpush1.msra.mxu0 0.0
    %230 = vmatprep.subr.mxu0 0.0
    %231 = vmatpush1.msra.mxu0 0.0
    %232 = vmatprep.subr.mxu0 0.0
    %233 = vmatpush1.msra.mxu0 0.0
    %234 = vmatprep.subr.mxu0 0.0
    %235 = vmatpush1.msra.mxu0 0.0
    %236 = vmatprep.subr.mxu0 0.0
    %237 = vmatpush1.msra.mxu0 0.0
    %238 = vmatprep.subr.mxu0 0.0
    %239 = vmatpush1.msra.mxu0 0.0
    %240 = vmatprep.subr.mxu0 0.0
    %241 = vmatpush1.msra.mxu0 0.0
    %242 = vmatprep.subr.mxu0 0.0
    %243 = vmatpush1.msra.mxu0 0.0
    %244 = vmatprep.subr.mxu0 0.0
    %245 = vmatpush1.msra.mxu0 0.0
    %246 = vmatprep.subr.mxu0 0.0
    %247 = vmatpush1.msra.mxu0 0.0
    %248 = vmatprep.subr.mxu0 0.0
    %249 = vmatpush1.msra.mxu0 0.0
    %250 = vmatprep.subr.mxu0 0.0
    %251 = vmatpush1.msra.mxu0 0.0
    %252 = vmatprep.subr.mxu0 0.0
    %253 = vmatpush1.msra.mxu0 0.0
    %254 = vmatprep.subr.mxu0 0.0
    %255 = vmatpush1.msra.mxu0 0.0
    %256 = vmatprep.subr.mxu0 0.0
    %257 = vmatpush1.msra.mxu0 0.0
    %258 = vmatprep.subr.mxu0 0.0
    %259 = vmatpush1.msra.mxu0 0.0
    %260 = vmatprep.subr.mxu0 0.0
    %261 = vmatpush1.msra.mxu0 0.0
    %262 = vmatprep.subr.mxu0 0.0
    %263 = vmatpush1.msra.mxu0 0.0
    %264 = vmatprep.subr.mxu0 0.0
    %265 = vmatpush1.msra.mxu0 0.0
    %266 = vmatprep.subr.mxu0 0.0
    %267 = vmatpush1.msra.mxu0 0.0
    %268 = vmatprep.subr.mxu0 0.0
    %269 = vmatpush1.msra.mxu0 0.0
    %270 = vmatprep.subr.mxu0 0.0
    %271 = vmatpush1.msra.mxu0 0.0
    %272 = vmatprep.subr.mxu0 0.0
    %273 = vmatpush1.msra.mxu0 0.0
    %274 = vmatprep.subr.mxu0 0.0
    %275 = vmatpush1.msra.mxu0 0.0
    %276 = vmatprep.mubr.f32.mxu0 0.0
    %277 = vmatmul.mubr.f32.gmra.mrb[0].mxu0 %v210
    %v278 = vpop.f32.mrb[0].mxu0
    %v279 = vadd.f32 %v208, %v278
    %v280 = vpop.f32.mrb[0].mxu0
    %281 = vdwg.mxu0
    %vm282 = vcmask 516096
    %283 = vst.msk [vmem:[#allocation2] sm:$0x1] %vm282, %v279
    // Predicated region
    $region30: #{tpu_custom_call.1} parent=1 // pred_check
      _
    $region31: #{tpu_custom_call.1} parent=1 // pred_check_branch
      %285 = sbr.rel (0) target = $region33
    $region32: #{tpu_custom_call.1} parent=1 // pred_region
      %s287 = ssub.s32 16, 16
      %288 = vsyncadd [#allocation3], %s287
      %s290 = sshll.u32 [#allocation2], 4
      %s291 = int_to_ptr.vmem [resolvable:$true] %s290
      %293 = dma.vmem_to_hbm [thread:$0]  %s291, 16, %s7, [#allocation3]
    $region33: #{tpu_custom_call.1} parent=1 // pred_fallthru
      _
    // Predicated region
    $region34: #{tpu_custom_call.1} parent=1 // pred_check
      _
    $region35: #{tpu_custom_call.1} parent=1 // pred_check_branch
      %295 = sbr.rel (0) target = $region37
    $region36: #{tpu_custom_call.1} parent=1 // pred_region
      %296 = dma.done [#allocation3], 16
    $region37: #{tpu_custom_call.1} parent=1 // pred_fallthru
      _
    %297 = vsyncpa [#allocation3], 1

</llo_original>
